<compile_context>
chip_gen: v6e
topology: v6e:2x2x1
jax: 0.10.0
libtpu: 0.0.40
codegen_flags: <defaults>
</compile_context>

<pallas_src>
import jax
import jax.numpy as jnp
from jax.experimental import pallas as pl
from jax.experimental.pallas import tpu as pltpu


def _im2col_flat(x, Hh, Ww):
    """Build the (9*Cin, Hh*Ww) folded-tap operand from a flat padded slab.

    x: (Cin, Hh*Ww + 2*(Ww+1)) -- NCHW-flattened image with (Ww+1) zeros on
    each side (covers the dh=+-1 row halo). Column wrap-around for the
    dw=+-1 taps is masked with an iota-based lane mask.
    """
    C = x.shape[0]
    HW = Hh * Ww
    col = jax.lax.broadcasted_iota(jnp.int32, (C, HW), 1) % Ww   # hoisted, once
    left_edge = col == 0
    right_edge = col == (Ww - 1)
    zeros = jnp.zeros((C, HW), x.dtype)
    pieces = []
    for kh in range(3):
        for kw in range(3):
            off = kh * Ww + kw           # = (dh+1)*Ww + (dw+1)
            s = x[:, off:off + HW]       # static lane-offset slice
            if kw == 0:                  # dw = -1: no left neighbour at w == 0
                s = jnp.where(left_edge, zeros, s)
            elif kw == 2:                # dw = +1: no right neighbour at w == Ww-1
                s = jnp.where(right_edge, zeros, s)
            pieces.append(s)
    return jnp.concatenate(pieces, axis=0)   # (9*Cin, Hh*Ww)


def _make_last_octave_kernel(H, W, Hl, Wl):
    def kernel(xh_ref, xl_ref, wh_ref, wl_ref, up_ref, o_ref):
        # xh_ref: (1, Ch_h, H*W + 2*(W+1))     flat padded high-freq input
        # xl_ref: (1, Ch_l, Hl*Wl + 2*(Wl+1))  flat padded low-freq input
        # wh_ref: (Cout, 9*Ch_h)  h2h weights, tap-major / channel-minor
        # wl_ref: (Cout, 9*Ch_l)  l2h weights
        # up_ref: (Hl*Wl, H*W)    constant 0/1 nearest-2x upsample matrix
        # o_ref : (1, Cout, H*W)  lane-dense output
        # --- low-frequency branch: conv then upsample, both as MXU matmuls ---
        cols_l = _im2col_flat(xl_ref[0], Hl, Wl)                       # (9Cl, HWl)
        y_l = jnp.dot(wl_ref[...], cols_l, preferred_element_type=jnp.float32)
        up = jnp.dot(y_l, up_ref[...], preferred_element_type=jnp.float32)  # (Cout, HW)
        # --- high-frequency branch + fused add, f32 accumulation ---
        cols_h = _im2col_flat(xh_ref[0], H, W)                         # (9Ch, HW)
        y_h = jnp.dot(wh_ref[...], cols_h, preferred_element_type=jnp.float32)
        o_ref[0] = (y_h + up).astype(o_ref.dtype)
    return kernel


def last_octave_conv(x_h_nchw, x_l_nchw, w_l2h_oihw, w_h2h_oihw,
                     *, matmul_dtype=jnp.bfloat16):
    """LastOctaveConv.forward for stride=1 (no h2g_pool). NCHW in, NCHW out."""
    # TODO(synk): stride==2 branch (AvgPool2d(2,2) on both inputs first) not implemented.
    N, ch_h, H, W = x_h_nchw.shape
    Nl, ch_l, Hl, Wl = x_l_nchw.shape
    assert Nl == N and (Hl, Wl) == (H // 2, W // 2)
    cout = w_h2h_oihw.shape[0]
    assert w_l2h_oihw.shape == (cout, ch_l, 3, 3)
    assert w_h2h_oihw.shape == (cout, ch_h, 3, 3)
    out_dtype = x_h_nchw.dtype
    HW, HWl = H * W, Hl * Wl

    # Flatten spatially (free reshape of NCHW) and 1-D pad (W+1) zeros per side:
    # one fused cast+pad pass instead of a 2-D jnp.pad round trip.
    def flat_pad(x, ww):
        n, c, hh, w_ = x.shape
        return jnp.pad(x.reshape(n, c, hh * w_).astype(matmul_dtype),
                       ((0, 0), (0, 0), (ww + 1, ww + 1)))

    xh_f = flat_pad(x_h_nchw, W)       # (N, ch_h, HW + 2W + 2)
    xl_f = flat_pad(x_l_nchw, Wl)      # (N, ch_l, HWl + 2Wl + 2)
    FH, FL = xh_f.shape[2], xl_f.shape[2]

    # OIHW -> (Cout, 9*Cin), tap-major / channel-minor (matches _im2col_flat).
    def pack_w(w):
        co, ci, kh, kw = w.shape
        return jnp.transpose(w, (0, 2, 3, 1)).reshape(co, kh * kw * ci).astype(matmul_dtype)

    wh = pack_w(w_h2h_oihw)
    wl = pack_w(w_l2h_oihw)

    # Nearest-2x upsample as a constant 0/1 matrix -> one MXU push in-kernel,
    # keeps everything lane-dense with zero in-kernel relayouts.
    # TODO(synk): for production-sized H/W, replace this dense (HWl, HW) matrix
    # and the whole-image-per-step blocking with row-tiled grid blocks + 1-row
    # halo (mandatory to stay inside v7x's 64 MiB VMEM); at 16x16 the entire
    # working set is a few KB.
    j = jnp.arange(HW)
    src = (j // W // 2) * Wl + (j % W) // 2
    up_mat = (src[None, :] == jnp.arange(HWl)[:, None]).astype(jnp.float32)

    kernel = _make_last_octave_kernel(H, W, Hl, Wl)
    grid_spec = pltpu.PrefetchScalarGridSpec(
        num_scalar_prefetch=0,
        grid=(N,),
        in_specs=[
            pl.BlockSpec((1, ch_h, FH), lambda n: (n, 0, 0)),
            pl.BlockSpec((1, ch_l, FL), lambda n: (n, 0, 0)),
            pl.BlockSpec((cout, 9 * ch_h), lambda n: (0, 0)),  # VMEM-resident weights
            pl.BlockSpec((cout, 9 * ch_l), lambda n: (0, 0)),
            pl.BlockSpec((HWl, HW), lambda n: (0, 0)),
        ],
        out_specs=pl.BlockSpec((1, cout, HW), lambda n: (n, 0, 0)),
    )
    out_flat = pl.pallas_call(
        kernel,
        out_shape=jax.ShapeDtypeStruct((N, cout, HW), out_dtype),
        grid_spec=grid_spec,
        compiler_params=pltpu.CompilerParams(
            dimension_semantics=("parallel",)),
    )(xh_f, xl_f, wh, wl, up_mat)

    # (N, Cout, H*W) -> (N, Cout, H, W): free metadata reshape in NCHW layout.
    return out_flat.reshape(N, cout, H, W)


if __name__ == "__main__":
    # module config: in_ch=4, out_ch=4, kernel_size=(3,3), alpha=0.5,
    #                stride=1, padding=1, bias=False
    in_ch, out_ch, alpha = 4, 4, 0.5
    ch_l = int(alpha * in_ch)          # low-frequency channels  (2)
    ch_h = in_ch - ch_l                # high-frequency channels (2)
    N, H, W = 2, 16, 16

    key = jax.random.PRNGKey(0)
    k1, k2, k3, k4 = jax.random.split(key, 4)
    x_h = jax.random.normal(k1, (N, ch_h, H, W), jnp.float32)
    x_l = jax.random.normal(k2, (N, ch_l, H // 2, W // 2), jnp.float32)
    # PyTorch Conv2d weight layout OIHW
    w_l2h = jax.random.normal(k3, (out_ch, ch_l, 3, 3), jnp.float32) * 0.1
    w_h2h = jax.random.normal(k4, (out_ch, ch_h, 3, 3), jnp.float32) * 0.1

    # Reference (PyTorch NCHW/OIHW convention).
    def ref_conv(x, w):
        return jax.lax.conv_general_dilated(
            x, w, window_strides=(1, 1), padding=((1, 1), (1, 1)),
            dimension_numbers=("NCHW", "OIHW", "NCHW"))

    y_ref_l = ref_conv(x_l, w_l2h)
    y_ref = ref_conv(x_h, w_h2h) + jnp.repeat(jnp.repeat(y_ref_l, 2, axis=2), 2, axis=3)

    # Strict numerics check with f32 matmul operands.
    out_f32 = jax.block_until_ready(
        last_octave_conv(x_h, x_l, w_l2h, w_h2h, matmul_dtype=jnp.float32))
    assert out_f32.shape == (N, out_ch, H, W), out_f32.shape
    assert jnp.allclose(out_f32, y_ref, atol=1e-4, rtol=1e-4)

    # Default (perf) mode: bf16 matmul operands, f32 accumulation.
    out = jax.block_until_ready(last_octave_conv(x_h, x_l, w_l2h, w_h2h))
    assert out.shape == (N, out_ch, H, W), out.shape
    assert jnp.allclose(out, y_ref, atol=5e-2, rtol=5e-2)

    print("KERNEL_OK")
</pallas_src>

<mosaic_0001>
module attributes {stable_mosaic.version = 11 : i64} {
  func.func @kernel(%arg0: i32, %arg1: memref<1x2x290xf32, #tpu.memory_space<vmem>>, %arg2: memref<1x2x82xf32, #tpu.memory_space<vmem>>, %arg3: memref<4x18xf32, #tpu.memory_space<vmem>>, %arg4: memref<4x18xf32, #tpu.memory_space<vmem>>, %arg5: memref<64x256xf32, #tpu.memory_space<vmem>>, %arg6: memref<1x4x256xf32, #tpu.memory_space<vmem>>) attributes {dimension_semantics = [#tpu.dimension_semantics<parallel>], iteration_bounds = array<i64: 2>, scalar_prefetch = 0 : i64, scratch_operands = 0 : i64, tpu.core_type = #tpu.core_type<tc>, window_params = [{transform_indices = @transform_0, window_bounds = array<i64: 1, 2, 290>}, {transform_indices = @transform_1, window_bounds = array<i64: 1, 2, 82>}, {pipeline_mode = #tpu.pipeline_mode<synchronous>, transform_indices = @transform_2, window_bounds = array<i64: 4, 18>}, {pipeline_mode = #tpu.pipeline_mode<synchronous>, transform_indices = @transform_3, window_bounds = array<i64: 4, 18>}, {pipeline_mode = #tpu.pipeline_mode<synchronous>, transform_indices = @transform_4, window_bounds = array<i64: 64, 256>}, {transform_indices = @transform_5, window_bounds = array<i64: 1, 4, 256>}]} {
    %c0 = arith.constant 0 : index
    %c0_0 = arith.constant 0 : index
    %c0_1 = arith.constant 0 : index
    %0 = vector.load %arg2[%c0, %c0_0, %c0_1] : memref<1x2x82xf32, #tpu.memory_space<vmem>>, vector<1x2x82xf32>
    %1 = vector.shape_cast %0 : vector<1x2x82xf32> to vector<2x82xf32>
    %2 = tpu.iota {dimensions = array<i32: 1>} : vector<2x64xi32>
    %c8_i32 = arith.constant 8 : i32
    %c0_i32 = arith.constant 0 : i32
    %3 = arith.cmpi eq, %c8_i32, %c0_i32 : i32
    %c1_i32 = arith.constant 1 : i32
    %4 = arith.select %3, %c1_i32, %c8_i32 : i32
    %5 = vector.broadcast %4 : i32 to vector<2x64xi32>
    %6 = arith.remsi %2, %5 : vector<2x64xi32>
    %c0_i32_2 = arith.constant 0 : i32
    %7 = vector.broadcast %c0_i32_2 : i32 to vector<2x64xi32>
    %8 = arith.cmpi ne, %6, %7 : vector<2x64xi32>
    %c0_i32_3 = arith.constant 0 : i32
    %9 = vector.broadcast %c0_i32_3 : i32 to vector<2x64xi32>
    %10 = arith.cmpi slt, %6, %9 : vector<2x64xi32>
    %c0_i32_4 = arith.constant 0 : i32
    %11 = arith.cmpi slt, %4, %c0_i32_4 : i32
    %12 = vector.broadcast %11 : i1 to vector<2x64xi1>
    %13 = vector.broadcast %12 : vector<2x64xi1> to vector<2x64xi1>
    %14 = arith.xori %10, %13 : vector<2x64xi1>
    %15 = arith.andi %14, %8 : vector<2x64xi1>
    %16 = vector.broadcast %4 : i32 to vector<2x64xi32>
    %17 = arith.addi %6, %16 : vector<2x64xi32>
    %18 = arith.select %15, %17, %6 : vector<2x64xi1>, vector<2x64xi32>
    %c0_i32_5 = arith.constant 0 : i32
    %19 = vector.broadcast %c0_i32_5 : i32 to vector<2x64xi32>
    %20 = arith.cmpi eq, %18, %19 : vector<2x64xi32>
    %c7_i32 = arith.constant 7 : i32
    %21 = vector.broadcast %c7_i32 : i32 to vector<2x64xi32>
    %22 = arith.cmpi eq, %18, %21 : vector<2x64xi32>
    %cst = arith.constant 0.000000e+00 : f32
    %23 = vector.broadcast %cst : f32 to vector<2x64xf32>
    %24 = vector.extract_strided_slice %1 {offsets = [0, 0], sizes = [2, 64], strides = [1, 1]} : vector<2x82xf32> to vector<2x64xf32>
    %25 = arith.select %20, %23, %24 : vector<2x64xi1>, vector<2x64xf32>
    %26 = vector.extract_strided_slice %1 {offsets = [0, 1], sizes = [2, 64], strides = [1, 1]} : vector<2x82xf32> to vector<2x64xf32>
    %27 = vector.extract_strided_slice %1 {offsets = [0, 2], sizes = [2, 64], strides = [1, 1]} : vector<2x82xf32> to vector<2x64xf32>
    %28 = arith.select %22, %23, %27 : vector<2x64xi1>, vector<2x64xf32>
    %29 = vector.extract_strided_slice %1 {offsets = [0, 8], sizes = [2, 64], strides = [1, 1]} : vector<2x82xf32> to vector<2x64xf32>
    %30 = arith.select %20, %23, %29 : vector<2x64xi1>, vector<2x64xf32>
    %31 = vector.extract_strided_slice %1 {offsets = [0, 9], sizes = [2, 64], strides = [1, 1]} : vector<2x82xf32> to vector<2x64xf32>
    %32 = vector.extract_strided_slice %1 {offsets = [0, 10], sizes = [2, 64], strides = [1, 1]} : vector<2x82xf32> to vector<2x64xf32>
    %33 = arith.select %22, %23, %32 : vector<2x64xi1>, vector<2x64xf32>
    %34 = vector.extract_strided_slice %1 {offsets = [0, 16], sizes = [2, 64], strides = [1, 1]} : vector<2x82xf32> to vector<2x64xf32>
    %35 = arith.select %20, %23, %34 : vector<2x64xi1>, vector<2x64xf32>
    %36 = vector.extract_strided_slice %1 {offsets = [0, 17], sizes = [2, 64], strides = [1, 1]} : vector<2x82xf32> to vector<2x64xf32>
    %37 = vector.extract_strided_slice %1 {offsets = [0, 18], sizes = [2, 64], strides = [1, 1]} : vector<2x82xf32> to vector<2x64xf32>
    %38 = arith.select %22, %23, %37 : vector<2x64xi1>, vector<2x64xf32>
    %39 = tpu.concatenate %25, %26, %28, %30, %31, %33, %35, %36, %38 in 0 : vector<2x64xf32>, vector<2x64xf32>, vector<2x64xf32>, vector<2x64xf32>, vector<2x64xf32>, vector<2x64xf32>, vector<2x64xf32>, vector<2x64xf32>, vector<2x64xf32> -> vector<18x64xf32>
    %c0_6 = arith.constant 0 : index
    %c0_7 = arith.constant 0 : index
    %40 = vector.load %arg4[%c0_6, %c0_7] : memref<4x18xf32, #tpu.memory_space<vmem>>, vector<4x18xf32>
    %cst_8 = arith.constant dense<0.000000e+00> : vector<4x64xf32>
    %41 = tpu.matmul %40, %39, %cst_8 {dimension_numbers = #tpu.dot_dimension_numbers<[1], [0], [0], [1], [0, 0, 1, 1], [], []>} : vector<4x18xf32>, vector<18x64xf32>, vector<4x64xf32> -> vector<4x64xf32>
    %c0_9 = arith.constant 0 : index
    %c0_10 = arith.constant 0 : index
    %42 = vector.load %arg5[%c0_9, %c0_10] : memref<64x256xf32, #tpu.memory_space<vmem>>, vector<64x256xf32>
    %cst_11 = arith.constant dense<0.000000e+00> : vector<4x256xf32>
    %43 = tpu.matmul %41, %42, %cst_11 {dimension_numbers = #tpu.dot_dimension_numbers<[1], [0], [0], [1], [0, 0, 1, 1], [], []>} : vector<4x64xf32>, vector<64x256xf32>, vector<4x256xf32> -> vector<4x256xf32>
    %c0_12 = arith.constant 0 : index
    %c0_13 = arith.constant 0 : index
    %c0_14 = arith.constant 0 : index
    %44 = vector.load %arg1[%c0_12, %c0_13, %c0_14] : memref<1x2x290xf32, #tpu.memory_space<vmem>>, vector<1x2x290xf32>
    %45 = vector.shape_cast %44 : vector<1x2x290xf32> to vector<2x290xf32>
    %46 = tpu.iota {dimensions = array<i32: 1>} : vector<2x256xi32>
    %c16_i32 = arith.constant 16 : i32
    %c0_i32_15 = arith.constant 0 : i32
    %47 = arith.cmpi eq, %c16_i32, %c0_i32_15 : i32
    %c1_i32_16 = arith.constant 1 : i32
    %48 = arith.select %47, %c1_i32_16, %c16_i32 : i32
    %49 = vector.broadcast %48 : i32 to vector<2x256xi32>
    %50 = arith.remsi %46, %49 : vector<2x256xi32>
    %c0_i32_17 = arith.constant 0 : i32
    %51 = vector.broadcast %c0_i32_17 : i32 to vector<2x256xi32>
    %52 = arith.cmpi ne, %50, %51 : vector<2x256xi32>
    %c0_i32_18 = arith.constant 0 : i32
    %53 = vector.broadcast %c0_i32_18 : i32 to vector<2x256xi32>
    %54 = arith.cmpi slt, %50, %53 : vector<2x256xi32>
    %c0_i32_19 = arith.constant 0 : i32
    %55 = arith.cmpi slt, %48, %c0_i32_19 : i32
    %56 = vector.broadcast %55 : i1 to vector<2x256xi1>
    %57 = vector.broadcast %56 : vector<2x256xi1> to vector<2x256xi1>
    %58 = arith.xori %54, %57 : vector<2x256xi1>
    %59 = arith.andi %58, %52 : vector<2x256xi1>
    %60 = vector.broadcast %48 : i32 to vector<2x256xi32>
    %61 = arith.addi %50, %60 : vector<2x256xi32>
    %62 = arith.select %59, %61, %50 : vector<2x256xi1>, vector<2x256xi32>
    %c0_i32_20 = arith.constant 0 : i32
    %63 = vector.broadcast %c0_i32_20 : i32 to vector<2x256xi32>
    %64 = arith.cmpi eq, %62, %63 : vector<2x256xi32>
    %c15_i32 = arith.constant 15 : i32
    %65 = vector.broadcast %c15_i32 : i32 to vector<2x256xi32>
    %66 = arith.cmpi eq, %62, %65 : vector<2x256xi32>
    %cst_21 = arith.constant 0.000000e+00 : f32
    %67 = vector.broadcast %cst_21 : f32 to vector<2x256xf32>
    %68 = vector.extract_strided_slice %45 {offsets = [0, 0], sizes = [2, 256], strides = [1, 1]} : vector<2x290xf32> to vector<2x256xf32>
    %69 = arith.select %64, %67, %68 : vector<2x256xi1>, vector<2x256xf32>
    %70 = vector.extract_strided_slice %45 {offsets = [0, 1], sizes = [2, 256], strides = [1, 1]} : vector<2x290xf32> to vector<2x256xf32>
    %71 = vector.extract_strided_slice %45 {offsets = [0, 2], sizes = [2, 256], strides = [1, 1]} : vector<2x290xf32> to vector<2x256xf32>
    %72 = arith.select %66, %67, %71 : vector<2x256xi1>, vector<2x256xf32>
    %73 = vector.extract_strided_slice %45 {offsets = [0, 16], sizes = [2, 256], strides = [1, 1]} : vector<2x290xf32> to vector<2x256xf32>
    %74 = arith.select %64, %67, %73 : vector<2x256xi1>, vector<2x256xf32>
    %75 = vector.extract_strided_slice %45 {offsets = [0, 17], sizes = [2, 256], strides = [1, 1]} : vector<2x290xf32> to vector<2x256xf32>
    %76 = vector.extract_strided_slice %45 {offsets = [0, 18], sizes = [2, 256], strides = [1, 1]} : vector<2x290xf32> to vector<2x256xf32>
    %77 = arith.select %66, %67, %76 : vector<2x256xi1>, vector<2x256xf32>
    %78 = vector.extract_strided_slice %45 {offsets = [0, 32], sizes = [2, 256], strides = [1, 1]} : vector<2x290xf32> to vector<2x256xf32>
    %79 = arith.select %64, %67, %78 : vector<2x256xi1>, vector<2x256xf32>
    %80 = vector.extract_strided_slice %45 {offsets = [0, 33], sizes = [2, 256], strides = [1, 1]} : vector<2x290xf32> to vector<2x256xf32>
    %81 = vector.extract_strided_slice %45 {offsets = [0, 34], sizes = [2, 256], strides = [1, 1]} : vector<2x290xf32> to vector<2x256xf32>
    %82 = arith.select %66, %67, %81 : vector<2x256xi1>, vector<2x256xf32>
    %83 = tpu.concatenate %69, %70, %72, %74, %75, %77, %79, %80, %82 in 0 : vector<2x256xf32>, vector<2x256xf32>, vector<2x256xf32>, vector<2x256xf32>, vector<2x256xf32>, vector<2x256xf32>, vector<2x256xf32>, vector<2x256xf32>, vector<2x256xf32> -> vector<18x256xf32>
    %c0_22 = arith.constant 0 : index
    %c0_23 = arith.constant 0 : index
    %84 = vector.load %arg3[%c0_22, %c0_23] : memref<4x18xf32, #tpu.memory_space<vmem>>, vector<4x18xf32>
    %cst_24 = arith.constant dense<0.000000e+00> : vector<4x256xf32>
    %85 = tpu.matmul %84, %83, %cst_24 {dimension_numbers = #tpu.dot_dimension_numbers<[1], [0], [0], [1], [0, 0, 1, 1], [], []>} : vector<4x18xf32>, vector<18x256xf32>, vector<4x256xf32> -> vector<4x256xf32>
    %86 = arith.addf %85, %43 : vector<4x256xf32>
    %c0_25 = arith.constant 0 : index
    %c0_26 = arith.constant 0 : index
    %c0_27 = arith.constant 0 : index
    %87 = vector.load %arg6[%c0_25, %c0_26, %c0_27] : memref<1x4x256xf32, #tpu.memory_space<vmem>>, vector<1x4x256xf32>
    %88 = vector.shape_cast %87 : vector<1x4x256xf32> to vector<4x256xf32>
    %89 = vector.shape_cast %86 : vector<4x256xf32> to vector<1x4x256xf32>
    tpu.vector_store %arg6[%c0_25, %c0_26, %c0_27], %89 {strides = array<i32>} : memref<1x4x256xf32, #tpu.memory_space<vmem>>, vector<1x4x256xf32>,
    return
  }
  func.func @transform_0(%arg0: i32) -> (i32, i32, i32) {
    %c0_i32 = arith.constant 0 : i32
    %c0_i32_0 = arith.constant 0 : i32
    %c0_i32_1 = arith.constant 0 : i32
    return %arg0, %c0_i32, %c0_i32_0 : i32, i32, i32
  }
  func.func @transform_1(%arg0: i32) -> (i32, i32, i32) {
    %c0_i32 = arith.constant 0 : i32
    %c0_i32_0 = arith.constant 0 : i32
    %c0_i32_1 = arith.constant 0 : i32
    return %arg0, %c0_i32, %c0_i32_0 : i32, i32, i32
  }
  func.func @transform_2(%arg0: i32) -> (i32, i32) {
    %c0_i32 = arith.constant 0 : i32
    %c0_i32_0 = arith.constant 0 : i32
    %c0_i32_1 = arith.constant 0 : i32
    return %c0_i32, %c0_i32_0 : i32, i32
  }
  func.func @transform_3(%arg0: i32) -> (i32, i32) {
    %c0_i32 = arith.constant 0 : i32
    %c0_i32_0 = arith.constant 0 : i32
    %c0_i32_1 = arith.constant 0 : i32
    return %c0_i32, %c0_i32_0 : i32, i32
  }
  func.func @transform_4(%arg0: i32) -> (i32, i32) {
    %c0_i32 = arith.constant 0 : i32
    %c0_i32_0 = arith.constant 0 : i32
    %c0_i32_1 = arith.constant 0 : i32
    return %c0_i32, %c0_i32_0 : i32, i32
  }
  func.func @transform_5(%arg0: i32) -> (i32, i32, i32) {
    %c0_i32 = arith.constant 0 : i32
    %c0_i32_0 = arith.constant 0 : i32
    %c0_i32_1 = arith.constant 0 : i32
    return %arg0, %c0_i32, %c0_i32_0 : i32, i32, i32
  }
}

</mosaic_0001>

<llo_original>
// kernel: tpu_custom_call.1
$region0: #{tpu_custom_call.1}
  #allocation0 [shape = 'u32[]', space=smem, size = 0x4, offset = 0x4, fixed_abs, tag = 'smem constant byte address 0x4 - core index']
  #allocation1 [shape = 'u32[144,128]{1,0:T(1,128)}', space=vmem, size = 0x12000, scoped, tag = 'internal scratch']
  %s0 = inlined_call_operand.hbm [shape: f32[2,2,290], index: 0, kind: input, shape index: {}]
  %s1 = inlined_call_operand.hbm [shape: f32[2,2,82], index: 1, kind: input, shape index: {}]
  %s2 = inlined_call_operand.hbm [shape: f32[4,18], index: 2, kind: input, shape index: {}]
  %s3 = inlined_call_operand.vmem [shape: f32[4,18], index: 3, kind: input, shape index: {}]
  %s4 = inlined_call_operand.hbm [shape: f32[64,256], index: 4, kind: input, shape index: {}]
  %s5 = inlined_call_operand.hbm [shape: f32[2,4,256], index: 5, kind: output, shape index: {}]
  %s6 = sld [smem:[#allocation0]]
  $region69: #{tpu_custom_call.1} parent=0
    _
  %s8 = ssub.s32 1, %s6
  %s9 = scalar_select 0, %s8, %s6
  $region1: #{tpu_custom_call.1} parent=0
    #allocation2 [shape = 'u8[6144]{0}', space=vmem, size = 0x1800, scoped, tag = 'input window, operand 0']
    #allocation3 [shape = 's32[2]{0}', space=sflag, size = 0x8, scoped, tag = 'scoped memory for tpu_custom_call.1']
    #allocation4 [shape = 's32[2]{0}', space=sflag, size = 0x8, scoped, tag = 'scoped memory for tpu_custom_call.1']
    #allocation5 [shape = 'u8[2048]{0}', space=vmem, size = 0x800, scoped, tag = 'input window, operand 1']
    #allocation6 [shape = 's32[2]{0}', space=sflag, size = 0x8, scoped, tag = 'scoped memory for tpu_custom_call.1']
    #allocation7 [shape = 'u8[2048]{0}', space=vmem, size = 0x800, scoped, tag = 'input window, operand 2, single buffered']
    #allocation8 [shape = 'u8[65536]{0}', space=vmem, size = 0x10000, scoped, tag = 'input window, operand 4, single buffered']
    #allocation9 [shape = 's32[1]{0}', space=sflag, size = 0x4, scoped, tag = 'scoped memory for tpu_custom_call.1']
    #allocation10 [shape = 'u8[8192]{0}', space=vmem, size = 0x2000, scoped, tag = 'output window, operand 0']
    %10 = vsyncpa [#allocation3], 0
    %s11 = scalar_lea.sflag [#allocation3], 1
    %12 = vsyncpa %s11, 0
    %13 = vsyncpa [#allocation6], 0
    %s14 = scalar_lea.sflag [#allocation6], 1
    %15 = vsyncpa %s14, 0
    %16 = vsyncpa [#allocation9], 0
    %17 = vsyncpa [#allocation4], 0
    %s18 = scalar_lea.sflag [#allocation4], 1
    %19 = vsyncpa %s18, 0
    loop: start=0, step=1, limit=4
    $region2: #{tpu_custom_call.1} parent=1 // loop_pre_header
      _
    $region3: #{tpu_custom_call.1} parent=1 // loop_header
      %s21 = sphi 0, %s25
      %p22 = scmp.ge.s32.totalorder %s21, 4
      %s31 = sphi 0, %s33
      %s34 = sphi 0, %s31
      %s35 = sphi 0, %s34
      %s51 = sphi 0, %s35
      %s57 = sphi 0, %s59
      %s60 = sphi 0, %s57
      %s61 = sphi 0, %s60
      %s77 = sphi 0, %s61
      %s81 = sphi 0, %s81
      %s83 = sphi 0, %s81
      %s84 = sphi 0, %s83
      %s98 = sphi 0, %s84
      %s102 = sphi 0, %s102
      %s104 = sphi 0, %s102
      %s105 = sphi 0, %s104
      %s119 = sphi 0, %s105
      %s123 = sphi 0, %s123
      %s125 = sphi 0, %s123
      %s126 = sphi 0, %s125
      %s140 = sphi 0, %s126
      %s146 = sphi 0, %s148
      %s149 = sphi 0, %s146
      %s150 = sphi 0, %s149
      %s166 = sphi 0, %s150
    $region4: #{tpu_custom_call.1} parent=1 // loop_header_branch
      %24 = sbr.rel (%p22) target = $region8
    $region5: #{tpu_custom_call.1} parent=1 // loop_body
      %s26 = ssub.s32 %s21, 1
      %s27 = ssub.s32 %s21, 2
      %s28 = sadd.s32 %s21, 1
      %s29 = ssub.s32 %s21, %s28
      %p30 = scmp.eq.s32.totalorder %s29, 0
      %s32 = sadd.s32 %s31, 1
      %s33 = scalar_select %p30, %s31, %s32
      %p36 = pneg %p30
      %p37 = scmp.eq.s32.totalorder %s21, 1
      %p38 = por %p36, %p37
      %p39 = scmp.ne.s32.totalorder %s31, %s34
      %p40 = scmp.eq.s32.totalorder %s21, 0
      %p41 = por %p39, %p40
      %p42 = scmp.ne.s32.totalorder %s31, %s34
      %p43 = scmp.eq.s32.totalorder %s26, 1
      %p44 = por %p42, %p43
      %p45 = scmp.ne.s32.totalorder %s34, %s35
      %p46 = scmp.eq.s32.totalorder %s26, 0
      %p47 = por %p45, %p46
      %p48 = scmp.ne.s32.totalorder %s34, %s35
      %p49 = scmp.eq.s32.totalorder %s27, 1
      %p50 = por %p48, %p49
      %p52 = scmp.ne.s32.totalorder %s35, %s51
      %p53 = scmp.eq.s32.totalorder %s27, 0
      %p54 = por %p52, %p53
      %s55 = ssub.s32 %s21, %s28
      %p56 = scmp.eq.s32.totalorder %s55, 0
      %s58 = sadd.s32 %s57, 1
      %s59 = scalar_select %p56, %s57, %s58
      %p62 = pneg %p56
      %p63 = scmp.eq.s32.totalorder %s21, 1
      %p64 = por %p62, %p63
      %p65 = scmp.ne.s32.totalorder %s57, %s60
      %p66 = scmp.eq.s32.totalorder %s21, 0
      %p67 = por %p65, %p66
      %p68 = scmp.ne.s32.totalorder %s57, %s60
      %p69 = scmp.eq.s32.totalorder %s26, 1
      %p70 = por %p68, %p69
      %p71 = scmp.ne.s32.totalorder %s60, %s61
      %p72 = scmp.eq.s32.totalorder %s26, 0
      %p73 = por %p71, %p72
      %p74 = scmp.ne.s32.totalorder %s60, %s61
      %p75 = scmp.eq.s32.totalorder %s27, 1
      %p76 = por %p74, %p75
      %p78 = scmp.ne.s32.totalorder %s61, %s77
      %p79 = scmp.eq.s32.totalorder %s27, 0
      %p80 = por %p78, %p79
      %s82 = sadd.s32 %s81, 1
      %p85 = scmp.eq.s32.totalorder %s21, 1
      %p86 = scmp.ne.s32.totalorder %s81, %s83
      %p87 = scmp.eq.s32.totalorder %s21, 0
      %p88 = por %p86, %p87
      %p89 = scmp.ne.s32.totalorder %s81, %s83
      %p90 = scmp.eq.s32.totalorder %s26, 1
      %p91 = por %p89, %p90
      %p92 = scmp.ne.s32.totalorder %s83, %s84
      %p93 = scmp.eq.s32.totalorder %s26, 0
      %p94 = por %p92, %p93
      %p95 = scmp.ne.s32.totalorder %s83, %s84
      %p96 = scmp.eq.s32.totalorder %s27, 1
      %p97 = por %p95, %p96
      %p99 = scmp.ne.s32.totalorder %s84, %s98
      %p100 = scmp.eq.s32.totalorder %s27, 0
      %p101 = por %p99, %p100
      %s103 = sadd.s32 %s102, 1
      %p106 = scmp.eq.s32.totalorder %s21, 1
      %p107 = scmp.ne.s32.totalorder %s102, %s104
      %p108 = scmp.eq.s32.totalorder %s21, 0
      %p109 = por %p107, %p108
      %p110 = scmp.ne.s32.totalorder %s102, %s104
      %p111 = scmp.eq.s32.totalorder %s26, 1
      %p112 = por %p110, %p111
      %p113 = scmp.ne.s32.totalorder %s104, %s105
      %p114 = scmp.eq.s32.totalorder %s26, 0
      %p115 = por %p113, %p114
      %p116 = scmp.ne.s32.totalorder %s104, %s105
      %p117 = scmp.eq.s32.totalorder %s27, 1
      %p118 = por %p116, %p117
      %p120 = scmp.ne.s32.totalorder %s105, %s119
      %p121 = scmp.eq.s32.totalorder %s27, 0
      %p122 = por %p120, %p121
      %s124 = sadd.s32 %s123, 1
      %p127 = scmp.eq.s32.totalorder %s21, 1
      %p128 = scmp.ne.s32.totalorder %s123, %s125
      %p129 = scmp.eq.s32.totalorder %s21, 0
      %p130 = por %p128, %p129
      %p131 = scmp.ne.s32.totalorder %s123, %s125
      %p132 = scmp.eq.s32.totalorder %s26, 1
      %p133 = por %p131, %p132
      %p134 = scmp.ne.s32.totalorder %s125, %s126
      %p135 = scmp.eq.s32.totalorder %s26, 0
      %p136 = por %p134, %p135
      %p137 = scmp.ne.s32.totalorder %s125, %s126
      %p138 = scmp.eq.s32.totalorder %s27, 1
      %p139 = por %p137, %p138
      %p141 = scmp.ne.s32.totalorder %s126, %s140
      %p142 = scmp.eq.s32.totalorder %s27, 0
      %p143 = por %p141, %p142
      %s144 = ssub.s32 %s21, %s28
      %p145 = scmp.eq.s32.totalorder %s144, 0
      %s147 = sadd.s32 %s146, 1
      %s148 = scalar_select %p145, %s146, %s147
      %p151 = pneg %p145
      %p152 = scmp.eq.s32.totalorder %s21, 1
      %p153 = por %p151, %p152
      %p154 = scmp.ne.s32.totalorder %s146, %s149
      %p155 = scmp.eq.s32.totalorder %s21, 0
      %p156 = por %p154, %p155
      %p157 = scmp.ne.s32.totalorder %s146, %s149
      %p158 = scmp.eq.s32.totalorder %s26, 1
      %p159 = por %p157, %p158
      %p160 = scmp.ne.s32.totalorder %s149, %s150
      %p161 = scmp.eq.s32.totalorder %s26, 0
      %p162 = por %p160, %p161
      %p163 = scmp.ne.s32.totalorder %s149, %s150
      %p164 = scmp.eq.s32.totalorder %s27, 1
      %p165 = por %p163, %p164
      %p167 = scmp.ne.s32.totalorder %s150, %s166
      %p168 = scmp.eq.s32.totalorder %s27, 0
      %p169 = por %p167, %p168
      %p170 = scmp.le.s32.totalorder 1, %s21
      %p171 = scmp.lt.s32.totalorder %s21, 3
      %p172 = pnand %p170, %p171
      %p173 = pneg %p172
      // Predicated region
      $region9: #{tpu_custom_call.1} parent=5 // pred_check
        _
      $region10: #{tpu_custom_call.1} parent=5 // pred_check_branch
        %175 = sbr.rel (%p172) target = $region12
      $region11: #{tpu_custom_call.1} parent=5 // pred_region
        %s176 = ssub.s32 %s21, 1
        // Predicated region
        $region13: #{tpu_custom_call.1} parent=11 // pred_check
          %p177 = pneg %p94
        $region14: #{tpu_custom_call.1} parent=11 // pred_check_branch
          %179 = sbr.rel (%p177) target = $region16
        $region15: #{tpu_custom_call.1} parent=11 // pred_region
          %s181 = ssub.s32 64, 64
          %182 = vsyncadd [#allocation6], %s181
          %s184 = sshll.u32 [#allocation7], 4
          %s185 = int_to_ptr.vmem [resolvable:$true] %s184
          %187 = dma.hbm_to_vmem [thread:$0]  %s2, 64, %s185, [#allocation6]
        $region16: #{tpu_custom_call.1} parent=11 // pred_fallthru
          _
        // Predicated region
        $region17: #{tpu_custom_call.1} parent=11 // pred_check
          %p188 = pneg %p115
        $region18: #{tpu_custom_call.1} parent=11 // pred_check_branch
          %190 = sbr.rel (%p188) target = $region20
        $region19: #{tpu_custom_call.1} parent=11 // pred_region
          _
        $region20: #{tpu_custom_call.1} parent=11 // pred_fallthru
          _
        // Predicated region
        $region21: #{tpu_custom_call.1} parent=11 // pred_check
          %p191 = pneg %p136
        $region22: #{tpu_custom_call.1} parent=11 // pred_check_branch
          %193 = sbr.rel (%p191) target = $region24
        $region23: #{tpu_custom_call.1} parent=11 // pred_region
          %s195 = ssub.s32 2048, 2048
          %196 = vsyncadd [#allocation9], %s195
          %s197 = sshll.u32 [#allocation8], 4
          %s198 = int_to_ptr.vmem [resolvable:$true] %s197
          %203 = dma.hbm_to_vmem [thread:$0]  %s4, 2048, %s198, [#allocation9], 256, 256, 16
        $region24: #{tpu_custom_call.1} parent=11 // pred_fallthru
          _
      $region12: #{tpu_custom_call.1} parent=5 // pred_fallthru
        _
      %p204 = scmp.lt.s32.totalorder %s21, 2
      // Predicated region
      $region25: #{tpu_custom_call.1} parent=5 // pred_check
        %p205 = pneg %p204
      $region26: #{tpu_custom_call.1} parent=5 // pred_check_branch
        %207 = sbr.rel (%p205) target = $region28
      $region27: #{tpu_custom_call.1} parent=5 // pred_region
        // Predicated region
        $region29: #{tpu_custom_call.1} parent=27 // pred_check
          %p208 = pneg %p41
        $region30: #{tpu_custom_call.1} parent=27 // pred_check_branch
          %210 = sbr.rel (%p208) target = $region32
        $region31: #{tpu_custom_call.1} parent=27 // pred_region
          %s211 = sand.u32 %s31, 1
          %s212 = scalar_lea.sflag [#allocation3], %s211
          %s213 = sand.u32 %s31, 1
          %s214 = smul.addr %s213, 6
          %s215 = scalar_lea.vmem [#allocation2], %s214
          %s217 = ssub.s32 96, 96
          %218 = vsyncadd %s212, %s217
          %s219 = smul.addr %s21, 3
          %s220 = smul.addr %s219, 32
          %s221 = scalar_lea.hbm %s0, %s220
          %s223 = sshll.u32 %s215, 4
          %s224 = int_to_ptr.vmem [resolvable:$true] %s223
          %226 = dma.hbm_to_vmem [thread:$0]  %s221, 96, %s224, %s212
        $region32: #{tpu_custom_call.1} parent=27 // pred_fallthru
          _
        // Predicated region
        $region33: #{tpu_custom_call.1} parent=27 // pred_check
          %p227 = pneg %p67
        $region34: #{tpu_custom_call.1} parent=27 // pred_check_branch
          %229 = sbr.rel (%p227) target = $region36
        $region35: #{tpu_custom_call.1} parent=27 // pred_region
          %s230 = sand.u32 %s21, 1
          %s231 = scalar_lea.sflag [#allocation6], %s230
          %s232 = sand.u32 %s57, 1
          %s233 = smul.addr %s232, 2
          %s234 = scalar_lea.vmem [#allocation5], %s233
          %s236 = ssub.s32 32, 32
          %237 = vsyncadd %s231, %s236
          %s238 = smul.addr %s21, 32
          %s239 = scalar_lea.hbm %s1, %s238
          %s241 = sshll.u32 %s234, 4
          %s242 = int_to_ptr.vmem [resolvable:$true] %s241
          %244 = dma.hbm_to_vmem [thread:$0]  %s239, 32, %s242, %s231
        $region36: #{tpu_custom_call.1} parent=27 // pred_fallthru
          _
      $region28: #{tpu_custom_call.1} parent=5 // pred_fallthru
        _
      %p245 = scmp.le.s32.totalorder 1, %s21
      %p246 = scmp.lt.s32.totalorder %s21, 3
      %p247 = pnand %p245, %p246
      %p248 = pneg %p247
      // Predicated region
      $region37: #{tpu_custom_call.1} parent=5 // pred_check
        _
      $region38: #{tpu_custom_call.1} parent=5 // pred_check_branch
        %250 = sbr.rel (%p247) target = $region40
      $region39: #{tpu_custom_call.1} parent=5 // pred_region
        %s251 = ssub.s32 %s21, 1
        %s252 = sand.u32 %s34, 1
        %s253 = scalar_lea.sflag [#allocation3], %s252
        %s254 = sand.u32 %s34, 1
        %s255 = smul.addr %s254, 6
        %s256 = scalar_lea.vmem [#allocation2], %s255
        // Predicated region
        $region41: #{tpu_custom_call.1} parent=39 // pred_check
          %p257 = pneg %p47
        $region42: #{tpu_custom_call.1} parent=39 // pred_check_branch
          %259 = sbr.rel (%p257) target = $region44
        $region43: #{tpu_custom_call.1} parent=39 // pred_region
          %260 = dma.done %s253, 96
        $region44: #{tpu_custom_call.1} parent=39 // pred_fallthru
          _
        %s261 = sand.u32 %s26, 1
        %s262 = scalar_lea.sflag [#allocation6], %s261
        %s263 = sand.u32 %s60, 1
        %s264 = smul.addr %s263, 2
        %s265 = scalar_lea.vmem [#allocation5], %s264
        // Predicated region
        $region45: #{tpu_custom_call.1} parent=39 // pred_check
          %p266 = pneg %p73
        $region46: #{tpu_custom_call.1} parent=39 // pred_check_branch
          %268 = sbr.rel (%p266) target = $region48
        $region47: #{tpu_custom_call.1} parent=39 // pred_region
          %269 = dma.done %s262, 32
        $region48: #{tpu_custom_call.1} parent=39 // pred_fallthru
          _
        // Predicated region
        $region49: #{tpu_custom_call.1} parent=39 // pred_check
          %p270 = pneg %p94
        $region50: #{tpu_custom_call.1} parent=39 // pred_check_branch
          %272 = sbr.rel (%p270) target = $region52
        $region51: #{tpu_custom_call.1} parent=39 // pred_region
          %273 = dma.done [#allocation6], 64
        $region52: #{tpu_custom_call.1} parent=39 // pred_fallthru
          _
        // Predicated region
        $region53: #{tpu_custom_call.1} parent=39 // pred_check
          %p274 = pneg %p136
        $region54: #{tpu_custom_call.1} parent=39 // pred_check_branch
          %276 = sbr.rel (%p274) target = $region56
        $region55: #{tpu_custom_call.1} parent=39 // pred_region
          %277 = dma.done [#allocation9], 2048
        $region56: #{tpu_custom_call.1} parent=39 // pred_fallthru
          _
        %s278 = sand.u32 %s34, 1
        %s279 = scalar_lea.sflag [#allocation3], %s278
        %s280 = sand.u32 %s34, 1
        %s281 = smul.addr %s280, 6
        %s282 = scalar_lea.vmem [#allocation2], %s281
        %p283 = pneg %p47
        %p284 = pneg %p44
        %s285 = sand.u32 %s26, 1
        %s286 = scalar_lea.sflag [#allocation6], %s285
        %s287 = sand.u32 %s60, 1
        %s288 = smul.addr %s287, 2
        %s289 = scalar_lea.vmem [#allocation5], %s288
        %p290 = pneg %p73
        %p291 = pneg %p70
        %p292 = pneg %p94
        %p293 = pneg %p91
        %p294 = pneg %p115
        %p295 = pneg %p112
        %p296 = pneg %p136
        %p297 = pneg %p133
        %p298 = pneg %p162
        %p299 = pneg %p159
        %s300 = sand.u32 %s149, 1
        %s301 = scalar_lea.sflag [#allocation4], %s300
        %s302 = sand.u32 %s149, 1
        %s303 = smul.addr %s302, 8
        %s304 = scalar_lea.vmem [#allocation10], %s303
        %v305 = vld [vmem:[%s265] sm:$0x3]
        %v306 = vlaneseq
        %v307 = vand.u32 %v306, 127
        %vm308 = vcmp.lt.s32.totalorder %v307, 0
        %v309 = vsub.s32 0, %v307
        %v310 = vsel %vm308, %v309, %v307
        %v311 = vshrl.u32 %v310, 3
        %v312 = vand.u32 %v310, 7
        %v313 = vsub.s32 0, %v312
        %v314 = vsel %vm308, %v313, %v312
        %vm315 = vcmp.ne.s32.totalorder %v314, 0
        %vm316 = vcmp.lt.s32.totalorder %v314, 0
        %vm317 = vmand %vm316, %vm315
        %v318 = vadd.s32 %v314, 8
        %v319 = vsel %vm317, %v318, %v314
        %vm320 = vcmp.eq.s32.totalorder %v319, 0
        %vm321 = vcmp.eq.s32.totalorder %v319, 7
        %v322 = vsel %vm320, 0.0, %v305
        %324 = vrot.lane.b32.xlu0 %v305, 126
        %v325 = vpop.permute.xlu0 %324
        %v327 = vsel %vm321, 0.0, %v325
        %328 = vrot.lane.b32.xlu0 %v305, 120
        %v329 = vpop.permute.xlu0 %328
        %v331 = vsel %vm320, 0.0, %v329
        %332 = vrot.lane.b32.xlu0 %v305, 118
        %v333 = vpop.permute.xlu0 %332
        %v335 = vsel %vm321, 0.0, %v333
        %336 = vrot.lane.b32.xlu0 %v305, 112
        %v337 = vpop.permute.xlu0 %336
        %v339 = vsel %vm320, 0.0, %v337
        %340 = vrot.lane.b32.xlu0 %v305, 110
        %v341 = vpop.permute.xlu0 %340
        %v343 = vsel %vm321, 0.0, %v341
        %v344 = vrot.slane %v305, 6
        %345 = vrot.lane.b32.xlu0 %v344, 127
        %v346 = vpop.permute.xlu0 %345
        %v349 = vrot.slane %v327, 4
        %v352 = vrot.slane %v331, 2
        %354 = vrot.lane.b32.xlu0 %v305, 119
        %v355 = vpop.permute.xlu0 %354
        %v358 = vrot.slane %v335, 6
        %v361 = vrot.slane %v339, 4
        %v363 = vrot.slane %v305, 2
        %364 = vrot.lane.b32.xlu0 %v363, 111
        %v365 = vpop.permute.xlu0 %364
        %vm367 = vcmask 1041408
        %v368 = vsel %vm367, %v322, %v346
        %vm369 = vcmask 1043456
        %v370 = vsel %vm369, %v368, %v349
        %vm371 = vcmask 1045504
        %v372 = vsel %vm371, %v370, %v352
        %v373 = vsel %vm367, %v355, %v358
        %v374 = vsel %vm369, %v373, %v361
        %v375 = vsel %vm371, %v374, %v365
        %v376 = vld [vmem:[%s3] sm:$0xf]
        %vm377 = vcmask 146432
        %v379 = vsel %vm377, %v376, 0
        %v382 = vsel %vm367, %v343, 0
        %384 = vmatprep.subr.mxu0 0.0
        %385 = vmatpush1.msra.mxu0 0.0
        %386 = vmatprep.subr.mxu0 0.0
        %387 = vmatpush1.msra.mxu0 0.0
        %388 = vmatprep.subr.mxu0 0.0
        %389 = vmatpush1.msra.mxu0 0.0
        %390 = vmatprep.subr.mxu0 0.0
        %391 = vmatpush1.msra.mxu0 0.0
        %392 = vmatprep.subr.mxu0 0.0
        %393 = vmatpush1.msra.mxu0 0.0
        %394 = vmatprep.subr.mxu0 0.0
        %395 = vmatpush1.msra.mxu0 0.0
        %396 = vmatprep.subr.mxu0 0.0
        %397 = vmatpush1.msra.mxu0 0.0
        %398 = vmatprep.subr.mxu0 0.0
        %399 = vmatpush1.msra.mxu0 0.0
        %400 = vmatprep.subr.mxu0 0.0
        %401 = vmatpush1.msra.mxu0 0.0
        %402 = vmatprep.subr.mxu0 0.0
        %403 = vmatpush1.msra.mxu0 0.0
        %404 = vmatprep.subr.mxu0 0.0
        %405 = vmatpush1.msra.mxu0 0.0
        %406 = vmatprep.subr.mxu0 0.0
        %407 = vmatpush1.msra.mxu0 0.0
        %408 = vmatprep.subr.mxu0 0.0
        %409 = vmatpush1.msra.mxu0 0.0
        %410 = vmatprep.subr.mxu0 0.0
        %411 = vmatpush1.msra.mxu0 %v382
        %412 = vmatprep.subr.mxu0 0.0
        %413 = vmatpush1.msra.mxu0 %v375
        %414 = vmatprep.subr.mxu0 0.0
        %415 = vmatpush1.msra.mxu0 %v372
        %416 = vmatprep.subr.mxu0 0.0
        %417 = vmatpush2.msra.mxu0 0.0
        %418 = vmatprep.subr.mxu0 0.0
        %419 = vmatpush2.msra.mxu0 0.0
        %420 = vmatprep.subr.mxu0 0.0
        %421 = vmatpush2.msra.mxu0 0.0
        %422 = vmatprep.subr.mxu0 0.0
        %423 = vmatpush2.msra.mxu0 0.0
        %424 = vmatprep.subr.mxu0 0.0
        %425 = vmatpush2.msra.mxu0 0.0
        %426 = vmatprep.subr.mxu0 0.0
        %427 = vmatpush2.msra.mxu0 0.0
        %428 = vmatprep.subr.mxu0 0.0
        %429 = vmatpush2.msra.mxu0 0.0
        %430 = vmatprep.subr.mxu0 0.0
        %431 = vmatpush2.msra.mxu0 0.0
        %432 = vmatprep.subr.mxu0 0.0
        %433 = vmatpush2.msra.mxu0 0.0
        %434 = vmatprep.subr.mxu0 0.0
        %435 = vmatpush2.msra.mxu0 0.0
        %436 = vmatprep.subr.mxu0 0.0
        %437 = vmatpush2.msra.mxu0 0.0
        %438 = vmatprep.subr.mxu0 0.0
        %439 = vmatpush2.msra.mxu0 0.0
        %440 = vmatprep.subr.mxu0 0.0
        %441 = vmatpush2.msra.mxu0 0.0
        %442 = vmatprep.subr.mxu0 0.0
        %443 = vmatpush2.msra.mxu0 0.0
        %444 = vmatprep.subr.mxu0 0.0
        %445 = vmatpush2.msra.mxu0 0.0
        %446 = vmatprep.subr.mxu0 0.0
        %447 = vmatpush2.msra.mxu0 0.0
        %448 = vmatprep.mubr.f32.mxu0 0.0
        %449 = vmatmul.mubr.f32.gmra.mxu0 %v379
        %v450 = vpop.f32.mrf.mxu0
        %v451 = vadd.f32 0.0, %v450
        %v452 = vpop.f32.mrf.mxu0
        %453 = vdwg.mxu0
        %v454 = vld [vmem:[#allocation8] sm:$0xff]
        %v455 = vld [vmem:[#allocation8 + $0x8] sm:$0xff]
        %v456 = vld [vmem:[#allocation8 + $0x10] sm:$0xff]
        %v457 = vld [vmem:[#allocation8 + $0x18] sm:$0xff]
        %v458 = vld [vmem:[#allocation8 + $0x20] sm:$0xff]
        %v459 = vld [vmem:[#allocation8 + $0x28] sm:$0xff]
        %v460 = vld [vmem:[#allocation8 + $0x30] sm:$0xff]
        %v461 = vld [vmem:[#allocation8 + $0x38] sm:$0xff]
        %v462 = vld [vmem:[#allocation8 + $0x40] sm:$0xff]
        %v463 = vld [vmem:[#allocation8 + $0x48] sm:$0xff]
        %v464 = vld [vmem:[#allocation8 + $0x50] sm:$0xff]
        %v465 = vld [vmem:[#allocation8 + $0x58] sm:$0xff]
        %v466 = vld [vmem:[#allocation8 + $0x60] sm:$0xff]
        %v467 = vld [vmem:[#allocation8 + $0x68] sm:$0xff]
        %v468 = vld [vmem:[#allocation8 + $0x70] sm:$0xff]
        %v469 = vld [vmem:[#allocation8 + $0x78] sm:$0xff]
        %vm470 = vcmask 523264
        %v472 = vsel %vm470, %v451, 0
        %474 = vmatprep.subr.mxu0 0.0
        %475 = vmatpush1.msra.mxu0 0.0
        %476 = vmatprep.subr.mxu0 0.0
        %477 = vmatpush1.msra.mxu0 0.0
        %478 = vmatprep.subr.mxu0 0.0
        %479 = vmatpush1.msra.mxu0 0.0
        %480 = vmatprep.subr.mxu0 0.0
        %481 = vmatpush1.msra.mxu0 0.0
        %482 = vmatprep.subr.mxu0 0.0
        %483 = vmatpush1.msra.mxu0 0.0
        %484 = vmatprep.subr.mxu0 0.0
        %485 = vmatpush1.msra.mxu0 0.0
        %486 = vmatprep.subr.mxu0 0.0
        %487 = vmatpush1.msra.mxu0 0.0
        %488 = vmatprep.subr.mxu0 0.0
        %489 = vmatpush1.msra.mxu0 0.0
        %490 = vmatprep.subr.mxu0 %v469
        %491 = vmatpush1.msra.mxu0 %v468
        %492 = vmatprep.subr.mxu0 %v467
        %493 = vmatpush1.msra.mxu0 %v466
        %494 = vmatprep.subr.mxu0 %v465
        %495 = vmatpush1.msra.mxu0 %v464
        %496 = vmatprep.subr.mxu0 %v463
        %497 = vmatpush1.msra.mxu0 %v462
        %498 = vmatprep.subr.mxu0 %v461
        %499 = vmatpush1.msra.mxu0 %v460
        %500 = vmatprep.subr.mxu0 %v459
        %501 = vmatpush1.msra.mxu0 %v458
        %502 = vmatprep.subr.mxu0 %v457
        %503 = vmatpush1.msra.mxu0 %v456
        %504 = vmatprep.subr.mxu0 %v455
        %505 = vmatpush1.msra.mxu0 %v454
        %506 = vmatprep.subr.mxu0 0.0
        %507 = vmatpush2.msra.mxu0 0.0
        %508 = vmatprep.subr.mxu0 0.0
        %509 = vmatpush2.msra.mxu0 0.0
        %510 = vmatprep.subr.mxu0 0.0
        %511 = vmatpush2.msra.mxu0 0.0
        %512 = vmatprep.subr.mxu0 0.0
        %513 = vmatpush2.msra.mxu0 0.0
        %514 = vmatprep.subr.mxu0 0.0
        %515 = vmatpush2.msra.mxu0 0.0
        %516 = vmatprep.subr.mxu0 0.0
        %517 = vmatpush2.msra.mxu0 0.0
        %518 = vmatprep.subr.mxu0 0.0
        %519 = vmatpush2.msra.mxu0 0.0
        %520 = vmatprep.subr.mxu0 0.0
        %521 = vmatpush2.msra.mxu0 0.0
        %522 = vmatprep.subr.mxu0 0.0
        %523 = vmatpush2.msra.mxu0 0.0
        %524 = vmatprep.subr.mxu0 0.0
        %525 = vmatpush2.msra.mxu0 0.0
        %526 = vmatprep.subr.mxu0 0.0
        %527 = vmatpush2.msra.mxu0 0.0
        %528 = vmatprep.subr.mxu0 0.0
        %529 = vmatpush2.msra.mxu0 0.0
        %530 = vmatprep.subr.mxu0 0.0
        %531 = vmatpush2.msra.mxu0 0.0
        %532 = vmatprep.subr.mxu0 0.0
        %533 = vmatpush2.msra.mxu0 0.0
        %534 = vmatprep.subr.mxu0 0.0
        %535 = vmatpush2.msra.mxu0 0.0
        %536 = vmatprep.subr.mxu0 0.0
        %537 = vmatpush2.msra.mxu0 0.0
        %538 = vmatprep.mubr.f32.mxu0 0.0
        %539 = vmatmul.mubr.f32.gmra.mxu0 %v472
        %v540 = vpop.f32.mrf.mxu0
        %v541 = vadd.f32 0.0, %v540
        %v542 = vpop.f32.mrf.mxu0
        %v543 = vadd.f32 0.0, %v542
        %544 = vdwg.mxu0
        %v545 = vld [vmem:[%s256] sm:$0x3f]
        %v546 = vadd.s32 %v307, 128
        %vm547 = vcmp.lt.s32.totalorder %v307, 0
        %v548 = vsub.s32 0, %v307
        %v549 = vsel %vm547, %v548, %v307
        %v550 = vshrl.u32 %v549, 4
        %v551 = vand.u32 %v549, 15
        %v552 = vsub.s32 0, %v551
        %v553 = vsel %vm547, %v552, %v551
        %vm554 = vcmp.lt.s32.totalorder %v546, 0
        %v555 = vsub.s32 0, %v546
        %v556 = vsel %vm554, %v555, %v546
        %v557 = vshrl.u32 %v556, 4
        %v558 = vand.u32 %v556, 15
        %v559 = vsub.s32 0, %v558
        %v560 = vsel %vm554, %v559, %v558
        %vm561 = vcmp.ne.s32.totalorder %v553, 0
        %vm562 = vcmp.ne.s32.totalorder %v560, 0
        %vm563 = vcmp.lt.s32.totalorder %v553, 0
        %vm564 = vcmp.lt.s32.totalorder %v560, 0
        %vm565 = vmand %vm563, %vm561
        %vm566 = vmand %vm564, %vm562
        %v567 = vadd.s32 %v553, 16
        %v568 = vadd.s32 %v560, 16
        %v569 = vsel %vm565, %v567, %v553
        %v570 = vsel %vm566, %v568, %v560
        %vm571 = vcmp.eq.s32.totalorder %v569, 0
        %vm572 = vcmp.eq.s32.totalorder %v570, 0
        %vm573 = vcmp.eq.s32.totalorder %v569, 15
        %vm574 = vcmp.eq.s32.totalorder %v570, 15
        %v577 = vunpack.c.l.s4 1983009808
        %v578 = vunpack.c.0.s8 %v577
        %v579 = vlaneseq
        %v580 = vshrl.u32 %v579, 7
        %v581 = vsub.s32 %v578, %v580
        %v582 = vrot.slane %v545, %v581
        %v583 = vcombine.high %v582, %v582
        %v586 = vsel %vm571, 0.0, %v582
        %v587 = vsel %vm572, 0.0, %v583
        %v588 = vcombine.high %v545, %v545
        %v590 = vunpack.c.l.s4 1983009808
        %v591 = vunpack.c.0.s8 %v590
        %v592 = vlaneseq
        %v593 = vshrl.u32 %v592, 7
        %v594 = vsub.s32 %v591, %v593
        %v595 = vrot.slane %v588, %v594
        %596 = vrot.lane.b32.xlu0 %v582, 126
        %v597 = vpop.permute.xlu0 %596
        %598 = vrot.lane.b32.xlu0 %v583, 126
        %v599 = vpop.permute.xlu0 %598
        %600 = vrot.lane.b32.xlu0 %v595, 126
        %v601 = vpop.permute.xlu0 %600
        %vm602 = vcmask 1031168
        %v603 = vsel %vm602, %v597, %v599
        %v604 = vsel %vm602, %v599, %v601
        %v607 = vsel %vm573, 0.0, %v603
        %v608 = vsel %vm574, 0.0, %v604
        %609 = vrot.lane.b32.xlu0 %v582, 112
        %v610 = vpop.permute.xlu0 %609
        %611 = vrot.lane.b32.xlu0 %v583, 112
        %v612 = vpop.permute.xlu0 %611
        %613 = vrot.lane.b32.xlu0 %v595, 112
        %v614 = vpop.permute.xlu0 %613
        %vm615 = vcmask 916480
        %v616 = vsel %vm615, %v610, %v612
        %v617 = vsel %vm615, %v612, %v614
        %v620 = vsel %vm571, 0.0, %v616
        %v621 = vsel %vm572, 0.0, %v617
        %622 = vrot.lane.b32.xlu0 %v582, 110
        %v623 = vpop.permute.xlu0 %622
        %624 = vrot.lane.b32.xlu0 %v583, 110
        %v625 = vpop.permute.xlu0 %624
        %626 = vrot.lane.b32.xlu0 %v595, 110
        %v627 = vpop.permute.xlu0 %626
        %vm628 = vcmask 900096
        %v629 = vsel %vm628, %v623, %v625
        %v630 = vsel %vm628, %v625, %v627
        %v633 = vsel %vm573, 0.0, %v629
        %v634 = vsel %vm574, 0.0, %v630
        %635 = vrot.lane.b32.xlu0 %v582, 96
        %v636 = vpop.permute.xlu0 %635
        %637 = vrot.lane.b32.xlu0 %v583, 96
        %v638 = vpop.permute.xlu0 %637
        %639 = vrot.lane.b32.xlu0 %v595, 96
        %v640 = vpop.permute.xlu0 %639
        %vm641 = vcmask 785408
        %v642 = vsel %vm641, %v636, %v638
        %v643 = vsel %vm641, %v638, %v640
        %v646 = vsel %vm571, 0.0, %v642
        %v647 = vsel %vm572, 0.0, %v643
        %648 = vrot.lane.b32.xlu0 %v582, 94
        %v649 = vpop.permute.xlu0 %648
        %650 = vrot.lane.b32.xlu0 %v583, 94
        %v651 = vpop.permute.xlu0 %650
        %652 = vrot.lane.b32.xlu0 %v595, 94
        %v653 = vpop.permute.xlu0 %652
        %vm654 = vcmask 769024
        %v655 = vsel %vm654, %v649, %v651
        %v656 = vsel %vm654, %v651, %v653
        %v659 = vsel %vm573, 0.0, %v655
        %v660 = vsel %vm574, 0.0, %v656
        %v661 = vcombine.low %v545, %v545
        %v663 = vunpack.c.l.s4 1983009808
        %v664 = vunpack.c.0.s8 %v663
        %v665 = vlaneseq
        %v666 = vshrl.u32 %v665, 7
        %v667 = vsub.s32 %v664, %v666
        %v668 = vrot.slane %v661, %v667
        %v669 = vcombine.high %v668, %v668
        %670 = vrot.lane.b32.xlu0 %v668, 127
        %v671 = vpop.permute.xlu0 %670
        %672 = vrot.lane.b32.xlu0 %v669, 127
        %v673 = vpop.permute.xlu0 %672
        %674 = vrot.lane.b32.xlu0 %v582, 127
        %v675 = vpop.permute.xlu0 %674
        %vm676 = vcmask 1039360
        %v677 = vsel %vm676, %v671, %v673
        %v678 = vsel %vm676, %v673, %v675
        %v683 = vrot.slane %v607, 4
        %v684 = vrot.slane %v608, 4
        %v689 = vrot.slane %v620, 2
        %v690 = vrot.slane %v621, 2
        %693 = vrot.lane.b32.xlu0 %v582, 111
        %v694 = vpop.permute.xlu0 %693
        %695 = vrot.lane.b32.xlu0 %v583, 111
        %v696 = vpop.permute.xlu0 %695
        %697 = vrot.lane.b32.xlu0 %v595, 111
        %v698 = vpop.permute.xlu0 %697
        %vm699 = vcmask 908288
        %v700 = vsel %vm699, %v694, %v696
        %v701 = vsel %vm699, %v696, %v698
        %v706 = vrot.slane %v633, 6
        %v707 = vrot.slane %v634, 6
        %v712 = vrot.slane %v646, 4
        %v713 = vrot.slane %v647, 4
        %v716 = vcombine.low %v668, %v668
        %v717 = vcombine.low %v582, %v582
        %718 = vrot.lane.b32.xlu0 %v716, 95
        %v719 = vpop.permute.xlu0 %718
        %720 = vrot.lane.b32.xlu0 %v668, 95
        %v721 = vpop.permute.xlu0 %720
        %722 = vrot.lane.b32.xlu0 %v717, 95
        %v723 = vpop.permute.xlu0 %722
        %vm724 = vcmask 777216
        %v725 = vsel %vm724, %v719, %v721
        %v726 = vsel %vm724, %v721, %v723
        %v729 = vsel %vm367, %v586, %v677
        %v730 = vsel %vm367, %v587, %v678
        %v731 = vsel %vm369, %v729, %v683
        %v732 = vsel %vm369, %v730, %v684
        %v733 = vsel %vm371, %v731, %v689
        %v734 = vsel %vm371, %v732, %v690
        %v735 = vsel %vm367, %v700, %v706
        %v736 = vsel %vm367, %v701, %v707
        %v737 = vsel %vm369, %v735, %v712
        %v738 = vsel %vm369, %v736, %v713
        %v739 = vsel %vm371, %v737, %v725
        %v740 = vsel %vm371, %v738, %v726
        %v741 = vld [vmem:[#allocation7] sm:$0xf]
        %v743 = vsel %vm377, %v741, 0
        %v746 = vsel %vm367, %v659, 0
        %v749 = vsel %vm367, %v660, 0
        %751 = vmatprep.subr.mxu0 0.0
        %752 = vmatpush1.msra.mxu0 0.0
        %753 = vmatprep.subr.mxu0 0.0
        %754 = vmatpush1.msra.mxu0 0.0
        %755 = vmatprep.subr.mxu0 0.0
        %756 = vmatpush1.msra.mxu0 0.0
        %757 = vmatprep.subr.mxu0 0.0
        %758 = vmatpush1.msra.mxu0 0.0
        %759 = vmatprep.subr.mxu0 0.0
        %760 = vmatpush1.msra.mxu0 0.0
        %761 = vmatprep.subr.mxu0 0.0
        %762 = vmatpush1.msra.mxu0 0.0
        %763 = vmatprep.subr.mxu0 0.0
        %764 = vmatpush1.msra.mxu0 0.0
        %765 = vmatprep.subr.mxu0 0.0
        %766 = vmatpush1.msra.mxu0 0.0
        %767 = vmatprep.subr.mxu0 0.0
        %768 = vmatpush1.msra.mxu0 0.0
        %769 = vmatprep.subr.mxu0 0.0
        %770 = vmatpush1.msra.mxu0 0.0
        %771 = vmatprep.subr.mxu0 0.0
        %772 = vmatpush1.msra.mxu0 0.0
        %773 = vmatprep.subr.mxu0 0.0
        %774 = vmatpush1.msra.mxu0 0.0
        %775 = vmatprep.subr.mxu0 0.0
        %776 = vmatpush1.msra.mxu0 0.0
        %777 = vmatprep.subr.mxu0 %v749
        %778 = vmatpush1.msra.mxu0 %v746
        %779 = vmatprep.subr.mxu0 %v740
        %780 = vmatpush1.msra.mxu0 %v739
        %781 = vmatprep.subr.mxu0 %v734
        %782 = vmatpush1.msra.mxu0 %v733
        %783 = vmatprep.subr.mxu0 0.0
        %784 = vmatpush2.msra.mxu0 0.0
        %785 = vmatprep.subr.mxu0 0.0
        %786 = vmatpush2.msra.mxu0 0.0
        %787 = vmatprep.subr.mxu0 0.0
        %788 = vmatpush2.msra.mxu0 0.0
        %789 = vmatprep.subr.mxu0 0.0
        %790 = vmatpush2.msra.mxu0 0.0
        %791 = vmatprep.subr.mxu0 0.0
        %792 = vmatpush2.msra.mxu0 0.0
        %793 = vmatprep.subr.mxu0 0.0
        %794 = vmatpush2.msra.mxu0 0.0
        %795 = vmatprep.subr.mxu0 0.0
        %796 = vmatpush2.msra.mxu0 0.0
        %797 = vmatprep.subr.mxu0 0.0
        %798 = vmatpush2.msra.mxu0 0.0
        %799 = vmatprep.subr.mxu0 0.0
        %800 = vmatpush2.msra.mxu0 0.0
        %801 = vmatprep.subr.mxu0 0.0
        %802 = vmatpush2.msra.mxu0 0.0
        %803 = vmatprep.subr.mxu0 0.0
        %804 = vmatpush2.msra.mxu0 0.0
        %805 = vmatprep.subr.mxu0 0.0
        %806 = vmatpush2.msra.mxu0 0.0
        %807 = vmatprep.subr.mxu0 0.0
        %808 = vmatpush2.msra.mxu0 0.0
        %809 = vmatprep.subr.mxu0 0.0
        %810 = vmatpush2.msra.mxu0 0.0
        %811 = vmatprep.subr.mxu0 0.0
        %812 = vmatpush2.msra.mxu0 0.0
        %813 = vmatprep.subr.mxu0 0.0
        %814 = vmatpush2.msra.mxu0 0.0
        %815 = vmatprep.mubr.f32.mxu0 0.0
        %816 = vmatmul.mubr.f32.gmra.mxu0 %v743
        %v817 = vpop.f32.mrf.mxu0
        %v818 = vadd.f32 %v541, %v817
        %v819 = vpop.f32.mrf.mxu0
        %v820 = vadd.f32 %v543, %v819
        %821 = vdwg.mxu0
        %v824 = vcombine.low %v818, %v820
        %826 = vst [vmem:[%s304] sm:$0xff] %v824
        %s827 = sand.u32 %s149, 1
        %s828 = scalar_lea.sflag [#allocation4], %s827
        %s829 = sand.u32 %s149, 1
        %s830 = smul.addr %s829, 8
        %s831 = scalar_lea.vmem [#allocation10], %s830
        // Predicated region
        $region57: #{tpu_custom_call.1} parent=39 // pred_check
          %p832 = pneg %p159
        $region58: #{tpu_custom_call.1} parent=39 // pred_check_branch
          %834 = sbr.rel (%p832) target = $region60
        $region59: #{tpu_custom_call.1} parent=39 // pred_region
          %s836 = ssub.s32 128, 128
          %837 = vsyncadd %s828, %s836
          %s838 = smul.addr %s26, 2
          %s839 = smul.addr %s838, 64
          %s840 = scalar_lea.hbm %s5, %s839
          %s842 = sshll.u32 %s831, 4
          %s843 = int_to_ptr.vmem [resolvable:$true] %s842
          %845 = dma.vmem_to_hbm [thread:$0]  %s843, 128, %s840, %s828
        $region60: #{tpu_custom_call.1} parent=39 // pred_fallthru
          _
      $region40: #{tpu_custom_call.1} parent=5 // pred_fallthru
        _
      %p846 = scmp.le.s32.totalorder 2, %s21
      // Predicated region
      $region61: #{tpu_custom_call.1} parent=5 // pred_check
        %p847 = pneg %p846
      $region62: #{tpu_custom_call.1} parent=5 // pred_check_branch
        %849 = sbr.rel (%p847) target = $region64
      $region63: #{tpu_custom_call.1} parent=5 // pred_region
        %s850 = ssub.s32 %s21, 2
        // Predicated region
        $region65: #{tpu_custom_call.1} parent=63 // pred_check
          %p851 = pneg %p165
        $region66: #{tpu_custom_call.1} parent=63 // pred_check_branch
          %853 = sbr.rel (%p851) target = $region68
        $region67: #{tpu_custom_call.1} parent=63 // pred_region
          %s854 = sand.u32 %s150, 1
          %s855 = scalar_lea.sflag [#allocation4], %s854
          %s856 = sand.u32 %s150, 1
          %s857 = smul.addr %s856, 8
          %s858 = scalar_lea.vmem [#allocation10], %s857
          %859 = dma.done %s855, 128
        $region68: #{tpu_custom_call.1} parent=63 // pred_fallthru
          _
      $region64: #{tpu_custom_call.1} parent=5 // pred_fallthru
        _
    $region6: #{tpu_custom_call.1} parent=1 // loop_footer
      %s25 = sadd.s32 1, %s21
    $region7: #{tpu_custom_call.1} parent=1 // loop_footer_branch
      %20 = sbr.rel target = $region3
    $region8: #{tpu_custom_call.1} parent=1 // loop_exit
      _
    %860 = vsyncpa [#allocation3], 1
    %s861 = scalar_lea.sflag [#allocation3], 1
    %862 = vsyncpa %s861, 1
    %863 = vsyncpa [#allocation6], 1
    %s864 = scalar_lea.sflag [#allocation6], 1
    %865 = vsyncpa %s864, 1
    %866 = vsyncpa [#allocation9], 1
    %867 = vsyncpa [#allocation4], 1
    %s868 = scalar_lea.sflag [#allocation4], 1
    %869 = vsyncpa %s868, 1

</llo_original>
